<compile_context>
chip_gen: v6e
topology: v6e:2x2x1
jax: 0.10.0
libtpu: 0.0.40
codegen_flags: <defaults>
</compile_context>

<pallas_src>
import functools
import math

import jax
import jax.numpy as jnp
from jax.experimental import pallas as pl
from jax.experimental.pallas import tpu as pltpu

ALPHA = 0.1
PDIST_EPS = 1e-6
BCE_LOG_CLAMP = -100.0

_PALLAS_MIN_ELEMS = 1 << 14  # below this, fused XLA beats kernel launch + DMA setup


def _roundup(x, m):
    return ((x + m - 1) // m) * m


def _otl_kernel(x_ref, y_ref, a_ref, p_ref, n_ref, bce_acc_ref, trip_acc_ref, *,
                n_rows, n_cls, tb, steps_per_split, total_steps, n_splits,
                ragged, xy_lane_dense, xy_rows, cb, hard_labels):
    c = pl.program_id(0)                     # core / batch-split index
    i = pl.program_id(1)                     # step within the split
    step = c * steps_per_split + i           # global batch-tile index

    @pl.when(i == 0)
    def _init():
        bce_acc_ref[...] = jnp.zeros_like(bce_acc_ref)
        trip_acc_ref[...] = jnp.zeros_like(trip_acc_ref)

    def _bce_elem(x, y):
        if hard_labels:
            # 1 log/element on the EUP; only valid for strictly 0/1 targets.
            return -jnp.maximum(jnp.log(jnp.where(y > 0.5, x, 1.0 - x)),
                                BCE_LOG_CLAMP)
        log_x = jnp.maximum(jnp.log(x), BCE_LOG_CLAMP)
        log_1mx = jnp.maximum(jnp.log(1.0 - x), BCE_LOG_CLAMP)
        return -(y * log_x + (1.0 - y) * log_1mx)

    def _accumulate(masked):
        if masked:
            row = step * tb + jax.lax.broadcasted_iota(jnp.int32, (tb, 1), 0)
            valid_row = row < n_rows

        # ---- loss1 partial: binary cross entropy ----
        x = x_ref[...].astype(jnp.float32)
        y = y_ref[...].astype(jnp.float32)
        bce = _bce_elem(x, y)
        if xy_lane_dense:
            # (cb, 128) lane-dense tile of the flattened (B*C,) BCE stream.
            if masked:
                ld_row = step * cb + jax.lax.broadcasted_iota(jnp.int32, (cb, 1), 0)
                bce = jnp.where(ld_row < xy_rows, bce, 0.0)    # select, not multiply
            part = jnp.sum(bce.reshape(cb // 8, 8, 128), axis=0)        # VPU adds
            bce_part = jnp.dot(part, jnp.ones((128, 1), jnp.float32),
                               preferred_element_type=jnp.float32)      # MXU reduce
        else:
            # (tb, C) row layout; reduce over C on the MXU.
            bce_rows = jnp.dot(bce, jnp.ones((n_cls, 1), jnp.float32),
                               preferred_element_type=jnp.float32)       # (tb, 1)
            if masked:
                bce_rows = jnp.where(valid_row, bce_rows, 0.0)
            bce_part = jnp.sum(bce_rows.reshape(tb // 8, 8, 1), axis=0)  # (8, 1)

        # ---- loss2 partial: triplet term, logistic = log2(1 + 2^d) ----
        a = a_ref[...].astype(jnp.float32)
        p = p_ref[...].astype(jnp.float32)
        n = n_ref[...].astype(jnp.float32)
        emb = a.shape[-1]
        ones_d = jnp.ones((emb, 1), jnp.float32)
        dp = a - p + PDIST_EPS
        dn = a - n + PDIST_EPS
        pos = jnp.sqrt(jnp.dot(dp * dp, ones_d, preferred_element_type=jnp.float32))
        neg = jnp.sqrt(jnp.dot(dn * dn, ones_d, preferred_element_type=jnp.float32))
        diff = neg - pos                                                 # (tb, 1)
        # Stable softplus-base-2: identical to log2(1 + 2^diff), no overflow cliff.
        logi = jnp.maximum(diff, 0.0) + jnp.log2(1.0 + jnp.exp2(-jnp.abs(diff)))
        if masked:
            logi = jnp.where(valid_row, logi, 0.0)
        trip_part = jnp.sum(logi.reshape(tb // 8, 8, 1), axis=0)         # (8, 1)

        bce_acc_ref[0] += bce_part
        trip_acc_ref[0] += trip_part

    last_real = total_steps - 1
    if ragged:
        # Only the last real tile can be ragged: mask there, skip phantom steps.
        @pl.when(step < last_real)
        def _full_tiles():
            _accumulate(False)

        @pl.when(step == last_real)
        def _tail_tile():
            _accumulate(True)
    elif n_splits * steps_per_split > total_steps:
        @pl.when(step < total_steps)
        def _real_tiles():
            _accumulate(False)
    else:
        _accumulate(False)


def _plan(batch, n_cls, emb_dim, xy_itemsize, apn_itemsize, lane_dense):
    """Generation-aware tile sizing using lane-padded VMEM footprints."""
    try:
        kind = jax.devices()[0].device_kind.lower()
    except Exception:  # pragma: no cover - defensive
        kind = ""
    if "v7" in kind:
        # 64 MiB physical / 32 MiB scoped default per TC; 2 TCs per chip.
        tile_budget, vmem_limit, n_splits = 16 << 20, 48 << 20, 2
    elif "v6" in kind or "v5" in kind:
        tile_budget, vmem_limit, n_splits = 24 << 20, 80 << 20, 1
    else:
        tile_budget, vmem_limit, n_splits = 8 << 20, None, 1

    # dtype-dependent sublane multiple: 8 f32 / 16 bf16 / 32 int8.
    row_mult = max(8, 32 // xy_itemsize, 32 // apn_itemsize)
    if lane_dense:
        # Ensure tb*C is a multiple of 1024 so the lane-dense BCE block is a
        # whole number of (8, 128) tiles.
        ld_mult = 1024 // math.gcd(n_cls, 1024)
        row_mult = row_mult * ld_mult // math.gcd(row_mult, ld_mult)

    xy_lane_bytes = (n_cls if lane_dense else _roundup(n_cls, 128)) * xy_itemsize
    row_bytes = 2 * xy_lane_bytes + 3 * _roundup(emb_dim, 128) * apn_itemsize
    tb = max(row_mult, (tile_budget // (2 * row_bytes)) // row_mult * row_mult)
    tb = min(tb, _roundup(batch, row_mult))
    return tb, row_mult, vmem_limit, n_splits


def ordinal_triplet_loss(logits, y_true, a, p, n, *, alpha=ALPHA,
                         hard_labels=False, tile_rows=None, force_pallas=False):
    B, C = logits.shape
    D = a.shape[-1]

    # Toy sizes: the fused-XLA reference beats a kernel launch + DMA setup.
    if not force_pallas and (logits.size + 3 * a.size) < _PALLAS_MIN_ELEMS:
        return _reference(logits, y_true, a, p, n, alpha=alpha)

    xy_isz = jnp.dtype(logits.dtype).itemsize
    apn_isz = jnp.dtype(a.dtype).itemsize

    # Lane-dense BCE stream whenever the (B, C) -> (B*C//128, 128) view is free.
    ld_mult = 1024 // math.gcd(C, 1024)
    lane_dense = (C % 128 != 0) and ((B * C) % 128 == 0) and (B >= ld_mult)

    tb, row_mult, vmem_limit, n_splits = _plan(B, C, D, xy_isz, apn_isz, lane_dense)
    if tile_rows is not None:
        tb = max(row_mult, (tile_rows // row_mult) * row_mult)
        tb = min(tb, _roundup(B, row_mult))

    total_steps = pl.cdiv(B, tb)
    spc = pl.cdiv(total_steps, n_splits)       # steps per core/split
    ragged = (B % tb) != 0

    if lane_dense:
        cb = (tb * C) // 128                   # lane-dense BCE rows per step
        xy_rows = (B * C) // 128
        x_in = logits.reshape(xy_rows, 128)    # free, contiguous reshape
        y_in = y_true.reshape(xy_rows, 128)
        xy_block = (cb, 128)
    else:
        cb = 0
        xy_rows = B
        x_in, y_in = logits, y_true
        xy_block = (tb, C)

    def _in_map(c, i):
        # Clamp phantom steps (odd step counts under the 2-core split) to a
        # valid block; their contribution is gated off inside the kernel.
        return (jnp.minimum(c * spc + i, total_steps - 1), 0)

    def _out_map(c, i):
        return (c, 0, 0)

    kernel = functools.partial(
        _otl_kernel, n_rows=B, n_cls=C, tb=tb, steps_per_split=spc,
        total_steps=total_steps, n_splits=n_splits, ragged=ragged,
        xy_lane_dense=lane_dense, xy_rows=xy_rows, cb=cb,
        hard_labels=bool(hard_labels))

    n_log = (1 if hard_labels else 2) * B * C
    in_bytes = (logits.size + y_true.size) * xy_isz + 3 * a.size * apn_isz
    cost = pl.CostEstimate(
        flops=int(5 * B * C + B * (6 * D + 10)),
        transcendentals=int(n_log + 4 * B),
        bytes_accessed=int(in_bytes + 2 * n_splits * 8 * 4))

    cp_kwargs = dict(dimension_semantics=("parallel", "arbitrary"))
    if vmem_limit is not None:
        cp_kwargs["vmem_limit_bytes"] = vmem_limit

    acc_shape = jax.ShapeDtypeStruct((n_splits, 8, 1), jnp.float32)
    acc_spec = pl.BlockSpec((1, 8, 1), _out_map)

    bce_acc, trip_acc = pl.pallas_call(
        kernel,
        out_shape=(acc_shape, acc_shape),
        grid_spec=pltpu.PrefetchScalarGridSpec(
            num_scalar_prefetch=0,
            grid=(n_splits, spc),
            in_specs=[
                pl.BlockSpec(xy_block, _in_map),      # logits
                pl.BlockSpec(xy_block, _in_map),      # y_true
                pl.BlockSpec((tb, D), _in_map),       # anchor
                pl.BlockSpec((tb, D), _in_map),       # positive
                pl.BlockSpec((tb, D), _in_map),       # negative
            ],
            out_specs=[acc_spec, acc_spec],
        ),
        compiler_params=pltpu.CompilerParams(**cp_kwargs),
        cost_estimate=cost,
    )(x_in, y_in, a, p, n)

    # Tiny finalize (a handful of scalar XLA ops): combine per-core vreg partials.
    loss1 = jnp.sum(bce_acc) / jnp.float32(B * C)
    loss2 = jnp.sum(trip_acc) / jnp.float32(B)
    return loss1 + jnp.float32(alpha) * loss2


def _reference(logits, y_true, a, p, n, *, alpha=ALPHA):
    """Pure-JAX reference mirroring the PyTorch module (including its 2^x form)."""
    x = logits.astype(jnp.float32)
    y = y_true.astype(jnp.float32)
    log_x = jnp.maximum(jnp.log(x), BCE_LOG_CLAMP)
    log_1mx = jnp.maximum(jnp.log(1.0 - x), BCE_LOG_CLAMP)
    loss1 = jnp.mean(-(y * log_x + (1.0 - y) * log_1mx))
    af, pf, nf = (t.astype(jnp.float32) for t in (a, p, n))
    pos = jnp.sqrt(jnp.sum((af - pf + PDIST_EPS) ** 2, axis=-1))
    neg = jnp.sqrt(jnp.sum((af - nf + PDIST_EPS) ** 2, axis=-1))
    loss2 = jnp.mean(jnp.log2(1.0 + jnp.exp2(neg - pos)))
    return loss1 + alpha * loss2


if __name__ == "__main__":
    def make(key, B, C, D):
        k1, k2, k3, k4, k5 = jax.random.split(key, 5)
        logits = jax.nn.sigmoid(jax.random.normal(k1, (B, C), dtype=jnp.float32))
        y_true = (jax.random.uniform(k2, (B, C)) > 0.5).astype(jnp.float32)
        a = jax.random.normal(k3, (B, D), dtype=jnp.float32)
        p = jax.random.normal(k4, (B, D), dtype=jnp.float32)
        n = jax.random.normal(k5, (B, D), dtype=jnp.float32)
        return logits, y_true, a, p, n

    k1, k2, k3 = jax.random.split(jax.random.PRNGKey(0), 3)

    # Case 1: module-sized small shapes (single ragged tile, row-layout BCE path).
    args1 = make(k1, 2, 4, 32)
    out1 = jax.block_until_ready(ordinal_triplet_loss(*args1, force_pallas=True))
    ref1 = _reference(*args1)
    assert jnp.allclose(out1, ref1, rtol=1e-5, atol=1e-5), (out1, ref1)

    # Case 2: multi-step grid with a ragged tail + hard-label (1-log) BCE path.
    args2 = make(k2, 40, 4, 32)
    out2 = jax.block_until_ready(
        ordinal_triplet_loss(*args2, hard_labels=True, tile_rows=16,
                             force_pallas=True))
    ref2 = _reference(*args2)
    assert jnp.allclose(out2, ref2, rtol=1e-5, atol=1e-5), (out2, ref2)

    # Case 3: lane-dense packed BCE stream (B*C a multiple of 128).
    args3 = make(k3, 64, 16, 32)
    out3 = jax.block_until_ready(ordinal_triplet_loss(*args3, force_pallas=True))
    ref3 = _reference(*args3)
    assert jnp.allclose(out3, ref3, rtol=1e-5, atol=1e-5), (out3, ref3)

    print("KERNEL_OK")
</pallas_src>

<mosaic_0001>
module attributes {stable_mosaic.version = 11 : i64} {
  func.func @_otl_kernel(%arg0: i32, %arg1: i32, %arg2: memref<8x4xf32, #tpu.memory_space<vmem>>, %arg3: memref<8x4xf32, #tpu.memory_space<vmem>>, %arg4: memref<8x32xf32, #tpu.memory_space<vmem>>, %arg5: memref<8x32xf32, #tpu.memory_space<vmem>>, %arg6: memref<8x32xf32, #tpu.memory_space<vmem>>, %arg7: memref<1x8x1xf32, #tpu.memory_space<vmem>>, %arg8: memref<1x8x1xf32, #tpu.memory_space<vmem>>) attributes {dimension_semantics = [#tpu.dimension_semantics<parallel>, #tpu.dimension_semantics<arbitrary>], iteration_bounds = array<i64: 1, 1>, scalar_prefetch = 0 : i64, scratch_operands = 0 : i64, tpu.core_type = #tpu.core_type<tc>, window_params = [{transform_indices = @transform_0, window_bounds = array<i64: 8, 4>}, {transform_indices = @transform_1, window_bounds = array<i64: 8, 4>}, {transform_indices = @transform_2, window_bounds = array<i64: 8, 32>}, {transform_indices = @transform_3, window_bounds = array<i64: 8, 32>}, {transform_indices = @transform_4, window_bounds = array<i64: 8, 32>}, {transform_indices = @transform_5, window_bounds = array<i64: 1, 8, 1>}, {transform_indices = @transform_6, window_bounds = array<i64: 1, 8, 1>}]} {
    %c1_i32 = arith.constant 1 : i32
    %0 = arith.muli %arg0, %c1_i32 : i32
    %1 = arith.addi %0, %arg1 : i32
    %c0_i32 = arith.constant 0 : i32
    %2 = arith.cmpi eq, %arg1, %c0_i32 : i32
    %3 = arith.extui %2 : i1 to i32
    %c0_i32_0 = arith.constant 0 : i32
    %4 = arith.cmpi ne, %3, %c0_i32_0 : i32
    scf.if %4 {
      %cst = arith.constant 0.000000e+00 : f32
      %11 = vector.broadcast %cst : f32 to vector<1x8x1xf32>
      %c0 = arith.constant 0 : index
      %c0_5 = arith.constant 0 : index
      %c0_6 = arith.constant 0 : index
      %12 = vector.load %arg7[%c0, %c0_5, %c0_6] : memref<1x8x1xf32, #tpu.memory_space<vmem>>, vector<1x8x1xf32>
      tpu.vector_store %arg7[%c0, %c0_5, %c0_6], %11 {strides = array<i32>} : memref<1x8x1xf32, #tpu.memory_space<vmem>>, vector<1x8x1xf32>,
      %cst_7 = arith.constant 0.000000e+00 : f32
      %13 = vector.broadcast %cst_7 : f32 to vector<1x8x1xf32>
      %c0_8 = arith.constant 0 : index
      %c0_9 = arith.constant 0 : index
      %c0_10 = arith.constant 0 : index
      %14 = vector.load %arg8[%c0_8, %c0_9, %c0_10] : memref<1x8x1xf32, #tpu.memory_space<vmem>>, vector<1x8x1xf32>
      tpu.vector_store %arg8[%c0_8, %c0_9, %c0_10], %13 {strides = array<i32>} : memref<1x8x1xf32, #tpu.memory_space<vmem>>, vector<1x8x1xf32>,
    } else {
    }
    %c0_i32_1 = arith.constant 0 : i32
    %5 = arith.cmpi slt, %1, %c0_i32_1 : i32
    %6 = arith.extui %5 : i1 to i32
    %c0_i32_2 = arith.constant 0 : i32
    %7 = arith.cmpi ne, %6, %c0_i32_2 : i32
    scf.if %7 {
      %c0 = arith.constant 0 : index
      %c0_5 = arith.constant 0 : index
      %11 = vector.load %arg2[%c0, %c0_5] : memref<8x4xf32, #tpu.memory_space<vmem>>, vector<8x4xf32>
      %c0_6 = arith.constant 0 : index
      %c0_7 = arith.constant 0 : index
      %12 = vector.load %arg3[%c0_6, %c0_7] : memref<8x4xf32, #tpu.memory_space<vmem>>, vector<8x4xf32>
      %13 = math.log %11 : vector<8x4xf32>
      %cst = arith.constant -1.000000e+02 : f32
      %14 = vector.broadcast %cst : f32 to vector<8x4xf32>
      %15 = arith.maximumf %13, %14 : vector<8x4xf32>
      %cst_8 = arith.constant 1.000000e+00 : f32
      %16 = vector.broadcast %cst_8 : f32 to vector<8x4xf32>
      %17 = arith.subf %16, %11 : vector<8x4xf32>
      %18 = math.log %17 : vector<8x4xf32>
      %cst_9 = arith.constant -1.000000e+02 : f32
      %19 = vector.broadcast %cst_9 : f32 to vector<8x4xf32>
      %20 = arith.maximumf %18, %19 : vector<8x4xf32>
      %21 = arith.mulf %12, %15 : vector<8x4xf32>
      %cst_10 = arith.constant 1.000000e+00 : f32
      %22 = vector.broadcast %cst_10 : f32 to vector<8x4xf32>
      %23 = arith.subf %22, %12 : vector<8x4xf32>
      %24 = arith.mulf %23, %20 : vector<8x4xf32>
      %25 = arith.addf %21, %24 : vector<8x4xf32>
      %cst_11 = arith.constant 0.000000e+00 : f32
      %26 = vector.broadcast %cst_11 : f32 to vector<8x4xf32>
      %27 = arith.subf %26, %25 : vector<8x4xf32>
      %cst_12 = arith.constant 1.000000e+00 : f32
      %28 = vector.broadcast %cst_12 : f32 to vector<4x1xf32>
      %cst_13 = arith.constant dense<0.000000e+00> : vector<8x1xf32>
      %29 = tpu.matmul %27, %28, %cst_13 {dimension_numbers = #tpu.dot_dimension_numbers<[1], [0], [0], [1], [0, 0, 1, 1], [], []>} : vector<8x4xf32>, vector<4x1xf32>, vector<8x1xf32> -> vector<8x1xf32>
      %30 = vector.shape_cast %29 : vector<8x1xf32> to vector<1x8x1xf32>
      %cst_14 = arith.constant dense<0.000000e+00> : vector<8x1xf32>
      %31 = vector.multi_reduction <add>, %30, %cst_14 [0] : vector<1x8x1xf32> to vector<8x1xf32>
      %c0_15 = arith.constant 0 : index
      %c0_16 = arith.constant 0 : index
      %32 = vector.load %arg4[%c0_15, %c0_16] : memref<8x32xf32, #tpu.memory_space<vmem>>, vector<8x32xf32>
      %c0_17 = arith.constant 0 : index
      %c0_18 = arith.constant 0 : index
      %33 = vector.load %arg5[%c0_17, %c0_18] : memref<8x32xf32, #tpu.memory_space<vmem>>, vector<8x32xf32>
      %c0_19 = arith.constant 0 : index
      %c0_20 = arith.constant 0 : index
      %34 = vector.load %arg6[%c0_19, %c0_20] : memref<8x32xf32, #tpu.memory_space<vmem>>, vector<8x32xf32>
      %cst_21 = arith.constant 1.000000e+00 : f32
      %35 = vector.broadcast %cst_21 : f32 to vector<32x1xf32>
      %36 = arith.subf %32, %33 : vector<8x32xf32>
      %cst_22 = arith.constant 9.99999997E-7 : f32
      %37 = vector.broadcast %cst_22 : f32 to vector<8x32xf32>
      %38 = arith.addf %36, %37 : vector<8x32xf32>
      %39 = arith.subf %32, %34 : vector<8x32xf32>
      %cst_23 = arith.constant 9.99999997E-7 : f32
      %40 = vector.broadcast %cst_23 : f32 to vector<8x32xf32>
      %41 = arith.addf %39, %40 : vector<8x32xf32>
      %42 = arith.mulf %38, %38 : vector<8x32xf32>
      %cst_24 = arith.constant dense<0.000000e+00> : vector<8x1xf32>
      %43 = tpu.matmul %42, %35, %cst_24 {dimension_numbers = #tpu.dot_dimension_numbers<[1], [0], [0], [1], [0, 0, 1, 1], [], []>} : vector<8x32xf32>, vector<32x1xf32>, vector<8x1xf32> -> vector<8x1xf32>
      %44 = math.sqrt %43 : vector<8x1xf32>
      %45 = arith.mulf %41, %41 : vector<8x32xf32>
      %cst_25 = arith.constant dense<0.000000e+00> : vector<8x1xf32>
      %46 = tpu.matmul %45, %35, %cst_25 {dimension_numbers = #tpu.dot_dimension_numbers<[1], [0], [0], [1], [0, 0, 1, 1], [], []>} : vector<8x32xf32>, vector<32x1xf32>, vector<8x1xf32> -> vector<8x1xf32>
      %47 = math.sqrt %46 : vector<8x1xf32>
      %48 = arith.subf %47, %44 : vector<8x1xf32>
      %cst_26 = arith.constant 0.000000e+00 : f32
      %49 = vector.broadcast %cst_26 : f32 to vector<8x1xf32>
      %50 = arith.maximumf %48, %49 : vector<8x1xf32>
      %51 = math.absf %48 : vector<8x1xf32>
      %cst_27 = arith.constant 0.000000e+00 : f32
      %52 = vector.broadcast %cst_27 : f32 to vector<8x1xf32>
      %53 = arith.subf %52, %51 : vector<8x1xf32>
      %54 = math.exp2 %53 : vector<8x1xf32>
      %cst_28 = arith.constant 1.000000e+00 : f32
      %55 = vector.broadcast %cst_28 : f32 to vector<8x1xf32>
      %56 = arith.addf %55, %54 : vector<8x1xf32>
      %57 = math.log %56 : vector<8x1xf32>
      %cst_29 = arith.constant 2.000000e+00 : f32
      %58 = math.log %cst_29 : f32
      %59 = vector.broadcast %58 : f32 to vector<8x1xf32>
      %60 = arith.divf %57, %59 : vector<8x1xf32>
      %61 = arith.addf %50, %60 : vector<8x1xf32>
      %62 = vector.shape_cast %61 : vector<8x1xf32> to vector<1x8x1xf32>
      %cst_30 = arith.constant dense<0.000000e+00> : vector<8x1xf32>
      %63 = vector.multi_reduction <add>, %62, %cst_30 [0] : vector<1x8x1xf32> to vector<8x1xf32>
      %c0_31 = arith.constant 0 : index
      %c0_32 = arith.constant 0 : index
      %c0_33 = arith.constant 0 : index
      %64 = vector.load %arg7[%c0_31, %c0_32, %c0_33] : memref<1x8x1xf32, #tpu.memory_space<vmem>>, vector<1x8x1xf32>
      %65 = vector.shape_cast %64 : vector<1x8x1xf32> to vector<8x1xf32>
      %66 = arith.addf %65, %31 : vector<8x1xf32>
      %c0_34 = arith.constant 0 : index
      %c0_35 = arith.constant 0 : index
      %c0_36 = arith.constant 0 : index
      %67 = vector.load %arg7[%c0_34, %c0_35, %c0_36] : memref<1x8x1xf32, #tpu.memory_space<vmem>>, vector<1x8x1xf32>
      %68 = vector.shape_cast %67 : vector<1x8x1xf32> to vector<8x1xf32>
      %69 = vector.shape_cast %66 : vector<8x1xf32> to vector<1x8x1xf32>
      tpu.vector_store %arg7[%c0_34, %c0_35, %c0_36], %69 {strides = array<i32>} : memref<1x8x1xf32, #tpu.memory_space<vmem>>, vector<1x8x1xf32>,
      %c0_37 = arith.constant 0 : index
      %c0_38 = arith.constant 0 : index
      %c0_39 = arith.constant 0 : index
      %70 = vector.load %arg8[%c0_37, %c0_38, %c0_39] : memref<1x8x1xf32, #tpu.memory_space<vmem>>, vector<1x8x1xf32>
      %71 = vector.shape_cast %70 : vector<1x8x1xf32> to vector<8x1xf32>
      %72 = arith.addf %71, %63 : vector<8x1xf32>
      %c0_40 = arith.constant 0 : index
      %c0_41 = arith.constant 0 : index
      %c0_42 = arith.constant 0 : index
      %73 = vector.load %arg8[%c0_40, %c0_41, %c0_42] : memref<1x8x1xf32, #tpu.memory_space<vmem>>, vector<1x8x1xf32>
      %74 = vector.shape_cast %73 : vector<1x8x1xf32> to vector<8x1xf32>
      %75 = vector.shape_cast %72 : vector<8x1xf32> to vector<1x8x1xf32>
      tpu.vector_store %arg8[%c0_40, %c0_41, %c0_42], %75 {strides = array<i32>} : memref<1x8x1xf32, #tpu.memory_space<vmem>>, vector<1x8x1xf32>,
    } else {
    }
    %c0_i32_3 = arith.constant 0 : i32
    %8 = arith.cmpi eq, %1, %c0_i32_3 : i32
    %9 = arith.extui %8 : i1 to i32
    %c0_i32_4 = arith.constant 0 : i32
    %10 = arith.cmpi ne, %9, %c0_i32_4 : i32
    scf.if %10 {
      %c8_i32 = arith.constant 8 : i32
      %11 = arith.muli %1, %c8_i32 : i32
      %12 = tpu.iota {dimensions = array<i32: 0>} : vector<8x1xi32>
      %13 = vector.broadcast %11 : i32 to vector<8x1xi32>
      %14 = arith.addi %13, %12 : vector<8x1xi32>
      %c2_i32 = arith.constant 2 : i32
      %15 = vector.broadcast %c2_i32 : i32 to vector<8x1xi32>
      %16 = arith.cmpi slt, %14, %15 : vector<8x1xi32>
      %c0 = arith.constant 0 : index
      %c0_5 = arith.constant 0 : index
      %17 = vector.load %arg2[%c0, %c0_5] : memref<8x4xf32, #tpu.memory_space<vmem>>, vector<8x4xf32>
      %c0_6 = arith.constant 0 : index
      %c0_7 = arith.constant 0 : index
      %18 = vector.load %arg3[%c0_6, %c0_7] : memref<8x4xf32, #tpu.memory_space<vmem>>, vector<8x4xf32>
      %19 = math.log %17 : vector<8x4xf32>
      %cst = arith.constant -1.000000e+02 : f32
      %20 = vector.broadcast %cst : f32 to vector<8x4xf32>
      %21 = arith.maximumf %19, %20 : vector<8x4xf32>
      %cst_8 = arith.constant 1.000000e+00 : f32
      %22 = vector.broadcast %cst_8 : f32 to vector<8x4xf32>
      %23 = arith.subf %22, %17 : vector<8x4xf32>
      %24 = math.log %23 : vector<8x4xf32>
      %cst_9 = arith.constant -1.000000e+02 : f32
      %25 = vector.broadcast %cst_9 : f32 to vector<8x4xf32>
      %26 = arith.maximumf %24, %25 : vector<8x4xf32>
      %27 = arith.mulf %18, %21 : vector<8x4xf32>
      %cst_10 = arith.constant 1.000000e+00 : f32
      %28 = vector.broadcast %cst_10 : f32 to vector<8x4xf32>
      %29 = arith.subf %28, %18 : vector<8x4xf32>
      %30 = arith.mulf %29, %26 : vector<8x4xf32>
      %31 = arith.addf %27, %30 : vector<8x4xf32>
      %cst_11 = arith.constant 0.000000e+00 : f32
      %32 = vector.broadcast %cst_11 : f32 to vector<8x4xf32>
      %33 = arith.subf %32, %31 : vector<8x4xf32>
      %cst_12 = arith.constant 1.000000e+00 : f32
      %34 = vector.broadcast %cst_12 : f32 to vector<4x1xf32>
      %cst_13 = arith.constant dense<0.000000e+00> : vector<8x1xf32>
      %35 = tpu.matmul %33, %34, %cst_13 {dimension_numbers = #tpu.dot_dimension_numbers<[1], [0], [0], [1], [0, 0, 1, 1], [], []>} : vector<8x4xf32>, vector<4x1xf32>, vector<8x1xf32> -> vector<8x1xf32>
      %cst_14 = arith.constant 0.000000e+00 : f32
      %36 = vector.broadcast %cst_14 : f32 to vector<8x1xf32>
      %37 = arith.select %16, %35, %36 : vector<8x1xi1>, vector<8x1xf32>
      %38 = vector.shape_cast %37 : vector<8x1xf32> to vector<1x8x1xf32>
      %cst_15 = arith.constant dense<0.000000e+00> : vector<8x1xf32>
      %39 = vector.multi_reduction <add>, %38, %cst_15 [0] : vector<1x8x1xf32> to vector<8x1xf32>
      %c0_16 = arith.constant 0 : index
      %c0_17 = arith.constant 0 : index
      %40 = vector.load %arg4[%c0_16, %c0_17] : memref<8x32xf32, #tpu.memory_space<vmem>>, vector<8x32xf32>
      %c0_18 = arith.constant 0 : index
      %c0_19 = arith.constant 0 : index
      %41 = vector.load %arg5[%c0_18, %c0_19] : memref<8x32xf32, #tpu.memory_space<vmem>>, vector<8x32xf32>
      %c0_20 = arith.constant 0 : index
      %c0_21 = arith.constant 0 : index
      %42 = vector.load %arg6[%c0_20, %c0_21] : memref<8x32xf32, #tpu.memory_space<vmem>>, vector<8x32xf32>
      %cst_22 = arith.constant 1.000000e+00 : f32
      %43 = vector.broadcast %cst_22 : f32 to vector<32x1xf32>
      %44 = arith.subf %40, %41 : vector<8x32xf32>
      %cst_23 = arith.constant 9.99999997E-7 : f32
      %45 = vector.broadcast %cst_23 : f32 to vector<8x32xf32>
      %46 = arith.addf %44, %45 : vector<8x32xf32>
      %47 = arith.subf %40, %42 : vector<8x32xf32>
      %cst_24 = arith.constant 9.99999997E-7 : f32
      %48 = vector.broadcast %cst_24 : f32 to vector<8x32xf32>
      %49 = arith.addf %47, %48 : vector<8x32xf32>
      %50 = arith.mulf %46, %46 : vector<8x32xf32>
      %cst_25 = arith.constant dense<0.000000e+00> : vector<8x1xf32>
      %51 = tpu.matmul %50, %43, %cst_25 {dimension_numbers = #tpu.dot_dimension_numbers<[1], [0], [0], [1], [0, 0, 1, 1], [], []>} : vector<8x32xf32>, vector<32x1xf32>, vector<8x1xf32> -> vector<8x1xf32>
      %52 = math.sqrt %51 : vector<8x1xf32>
      %53 = arith.mulf %49, %49 : vector<8x32xf32>
      %cst_26 = arith.constant dense<0.000000e+00> : vector<8x1xf32>
      %54 = tpu.matmul %53, %43, %cst_26 {dimension_numbers = #tpu.dot_dimension_numbers<[1], [0], [0], [1], [0, 0, 1, 1], [], []>} : vector<8x32xf32>, vector<32x1xf32>, vector<8x1xf32> -> vector<8x1xf32>
      %55 = math.sqrt %54 : vector<8x1xf32>
      %56 = arith.subf %55, %52 : vector<8x1xf32>
      %cst_27 = arith.constant 0.000000e+00 : f32
      %57 = vector.broadcast %cst_27 : f32 to vector<8x1xf32>
      %58 = arith.maximumf %56, %57 : vector<8x1xf32>
      %59 = math.absf %56 : vector<8x1xf32>
      %cst_28 = arith.constant 0.000000e+00 : f32
      %60 = vector.broadcast %cst_28 : f32 to vector<8x1xf32>
      %61 = arith.subf %60, %59 : vector<8x1xf32>
      %62 = math.exp2 %61 : vector<8x1xf32>
      %cst_29 = arith.constant 1.000000e+00 : f32
      %63 = vector.broadcast %cst_29 : f32 to vector<8x1xf32>
      %64 = arith.addf %63, %62 : vector<8x1xf32>
      %65 = math.log %64 : vector<8x1xf32>
      %cst_30 = arith.constant 2.000000e+00 : f32
      %66 = math.log %cst_30 : f32
      %67 = vector.broadcast %66 : f32 to vector<8x1xf32>
      %68 = arith.divf %65, %67 : vector<8x1xf32>
      %69 = arith.addf %58, %68 : vector<8x1xf32>
      %cst_31 = arith.constant 0.000000e+00 : f32
      %70 = vector.broadcast %cst_31 : f32 to vector<8x1xf32>
      %71 = arith.select %16, %69, %70 : vector<8x1xi1>, vector<8x1xf32>
      %72 = vector.shape_cast %71 : vector<8x1xf32> to vector<1x8x1xf32>
      %cst_32 = arith.constant dense<0.000000e+00> : vector<8x1xf32>
      %73 = vector.multi_reduction <add>, %72, %cst_32 [0] : vector<1x8x1xf32> to vector<8x1xf32>
      %c0_33 = arith.constant 0 : index
      %c0_34 = arith.constant 0 : index
      %c0_35 = arith.constant 0 : index
      %74 = vector.load %arg7[%c0_33, %c0_34, %c0_35] : memref<1x8x1xf32, #tpu.memory_space<vmem>>, vector<1x8x1xf32>
      %75 = vector.shape_cast %74 : vector<1x8x1xf32> to vector<8x1xf32>
      %76 = arith.addf %75, %39 : vector<8x1xf32>
      %c0_36 = arith.constant 0 : index
      %c0_37 = arith.constant 0 : index
      %c0_38 = arith.constant 0 : index
      %77 = vector.load %arg7[%c0_36, %c0_37, %c0_38] : memref<1x8x1xf32, #tpu.memory_space<vmem>>, vector<1x8x1xf32>
      %78 = vector.shape_cast %77 : vector<1x8x1xf32> to vector<8x1xf32>
      %79 = vector.shape_cast %76 : vector<8x1xf32> to vector<1x8x1xf32>
      tpu.vector_store %arg7[%c0_36, %c0_37, %c0_38], %79 {strides = array<i32>} : memref<1x8x1xf32, #tpu.memory_space<vmem>>, vector<1x8x1xf32>,
      %c0_39 = arith.constant 0 : index
      %c0_40 = arith.constant 0 : index
      %c0_41 = arith.constant 0 : index
      %80 = vector.load %arg8[%c0_39, %c0_40, %c0_41] : memref<1x8x1xf32, #tpu.memory_space<vmem>>, vector<1x8x1xf32>
      %81 = vector.shape_cast %80 : vector<1x8x1xf32> to vector<8x1xf32>
      %82 = arith.addf %81, %73 : vector<8x1xf32>
      %c0_42 = arith.constant 0 : index
      %c0_43 = arith.constant 0 : index
      %c0_44 = arith.constant 0 : index
      %83 = vector.load %arg8[%c0_42, %c0_43, %c0_44] : memref<1x8x1xf32, #tpu.memory_space<vmem>>, vector<1x8x1xf32>
      %84 = vector.shape_cast %83 : vector<1x8x1xf32> to vector<8x1xf32>
      %85 = vector.shape_cast %82 : vector<8x1xf32> to vector<1x8x1xf32>
      tpu.vector_store %arg8[%c0_42, %c0_43, %c0_44], %85 {strides = array<i32>} : memref<1x8x1xf32, #tpu.memory_space<vmem>>, vector<1x8x1xf32>,
    } else {
    }
    return
  }
  func.func @transform_0(%arg0: i32, %arg1: i32) -> (i32, i32) {
    %c1_i32 = arith.constant 1 : i32
    %0 = arith.muli %arg0, %c1_i32 : i32
    %1 = arith.addi %0, %arg1 : i32
    %c0_i32 = arith.constant 0 : i32
    %2 = arith.minsi %1, %c0_i32 : i32
    %c0_i32_0 = arith.constant 0 : i32
    %c0_i32_1 = arith.constant 0 : i32
    return %2, %c0_i32_0 : i32, i32
  }
  func.func @transform_1(%arg0: i32, %arg1: i32) -> (i32, i32) {
    %c1_i32 = arith.constant 1 : i32
    %0 = arith.muli %arg0, %c1_i32 : i32
    %1 = arith.addi %0, %arg1 : i32
    %c0_i32 = arith.constant 0 : i32
    %2 = arith.minsi %1, %c0_i32 : i32
    %c0_i32_0 = arith.constant 0 : i32
    %c0_i32_1 = arith.constant 0 : i32
    return %2, %c0_i32_0 : i32, i32
  }
  func.func @transform_2(%arg0: i32, %arg1: i32) -> (i32, i32) {
    %c1_i32 = arith.constant 1 : i32
    %0 = arith.muli %arg0, %c1_i32 : i32
    %1 = arith.addi %0, %arg1 : i32
    %c0_i32 = arith.constant 0 : i32
    %2 = arith.minsi %1, %c0_i32 : i32
    %c0_i32_0 = arith.constant 0 : i32
    %c0_i32_1 = arith.constant 0 : i32
    return %2, %c0_i32_0 : i32, i32
  }
  func.func @transform_3(%arg0: i32, %arg1: i32) -> (i32, i32) {
    %c1_i32 = arith.constant 1 : i32
    %0 = arith.muli %arg0, %c1_i32 : i32
    %1 = arith.addi %0, %arg1 : i32
    %c0_i32 = arith.constant 0 : i32
    %2 = arith.minsi %1, %c0_i32 : i32
    %c0_i32_0 = arith.constant 0 : i32
    %c0_i32_1 = arith.constant 0 : i32
    return %2, %c0_i32_0 : i32, i32
  }
  func.func @transform_4(%arg0: i32, %arg1: i32) -> (i32, i32) {
    %c1_i32 = arith.constant 1 : i32
    %0 = arith.muli %arg0, %c1_i32 : i32
    %1 = arith.addi %0, %arg1 : i32
    %c0_i32 = arith.constant 0 : i32
    %2 = arith.minsi %1, %c0_i32 : i32
    %c0_i32_0 = arith.constant 0 : i32
    %c0_i32_1 = arith.constant 0 : i32
    return %2, %c0_i32_0 : i32, i32
  }
  func.func @transform_5(%arg0: i32, %arg1: i32) -> (i32, i32, i32) {
    %c0_i32 = arith.constant 0 : i32
    %c0_i32_0 = arith.constant 0 : i32
    %c0_i32_1 = arith.constant 0 : i32
    return %arg0, %c0_i32, %c0_i32_0 : i32, i32, i32
  }
  func.func @transform_6(%arg0: i32, %arg1: i32) -> (i32, i32, i32) {
    %c0_i32 = arith.constant 0 : i32
    %c0_i32_0 = arith.constant 0 : i32
    %c0_i32_1 = arith.constant 0 : i32
    return %arg0, %c0_i32, %c0_i32_0 : i32, i32, i32
  }
}

</mosaic_0001>

<llo_original>
// kernel: tpu_custom_call.1
$region0: #{tpu_custom_call.1}
  #allocation0 [shape = 'u32[]', space=smem, size = 0x4, offset = 0x4, fixed_abs, tag = 'smem constant byte address 0x4 - core index']
  #allocation1 [shape = 'u32[144,128]{1,0:T(1,128)}', space=vmem, size = 0x12000, scoped, tag = 'internal scratch']
  %s0 = inlined_call_operand.hbm [shape: f32[2,4], index: 0, kind: input, shape index: {}]
  %s1 = inlined_call_operand.hbm [shape: f32[2,4], index: 1, kind: input, shape index: {}]
  %s2 = inlined_call_operand.vmem [shape: f32[2,32], index: 2, kind: input, shape index: {}]
  %s3 = inlined_call_operand.vmem [shape: f32[2,32], index: 3, kind: input, shape index: {}]
  %s4 = inlined_call_operand.vmem [shape: f32[2,32], index: 4, kind: input, shape index: {}]
  %s5 = inlined_call_operand.vmem [shape: f32[1,8,1], index: 5, kind: output, shape index: {0}]
  %s6 = inlined_call_operand.vmem [shape: f32[1,8,1], index: 6, kind: output, shape index: {1}]
  %7 = xla_tuple %s5, %s6
  %s8 = sld [smem:[#allocation0]]
  $region58: #{tpu_custom_call.1} parent=0
    _
  %s10 = ssub.s32 1, %s8
  %s11 = scalar_select 0, %s10, %s8
  $region1: #{tpu_custom_call.1} parent=0
    #allocation2 [shape = 'u8[4096]{0}', space=vmem, size = 0x1000, scoped, tag = 'input window, operand 0, single buffered']
    #allocation3 [shape = 's32[1]{0}', space=sflag, size = 0x4, scoped, tag = 'scoped memory for tpu_custom_call.1']
    #allocation4 [shape = 'u8[4096]{0}', space=vmem, size = 0x1000, scoped, tag = 'input window, operand 1, single buffered']
    #allocation5 [shape = 's32[1]{0}', space=sflag, size = 0x4, scoped, tag = 'scoped memory for tpu_custom_call.1']
    %12 = vsyncpa [#allocation3], 0
    %13 = vsyncpa [#allocation5], 0
    // Predicated region
    $region2: #{tpu_custom_call.1} parent=1 // pred_check
      _
    $region3: #{tpu_custom_call.1} parent=1 // pred_check_branch
      %15 = sbr.rel (0) target = $region5
    $region4: #{tpu_custom_call.1} parent=1 // pred_region
      %s16 = sadd.s32 0, 0
      %p17 = scmp.lt.s32.totalorder %s16, 0
      %s18 = scalar_select %p17, %s16, 0
      %s19 = smul.u32 4, %s18
      %s20 = ssub.s32 1, %s19
      %s21 = smul.u32 32, %s20
      %s23 = ssub.s32 128, %s21
      %24 = vsyncadd [#allocation3], %s23
      %p25 = scmp.ne.s32.totalorder 0, %s21
      %s26 = smul.addr %s19, 32
      %s27 = scalar_lea.hbm %s0, %s26
      %s28 = smul.u32 2, %s20
      %s29 = sshll.u32 [#allocation2], 4
      %s30 = int_to_ptr.vmem [resolvable:$true] %s29
      %s31 = sshll.u32 %s28, 4
      %35 = dma.hbm_to_vmem [thread:$0]  (%p25), %s27, %s31, %s30, [#allocation3], 32, 32, 2
    $region5: #{tpu_custom_call.1} parent=1 // pred_fallthru
      _
    // Predicated region
    $region6: #{tpu_custom_call.1} parent=1 // pred_check
      _
    $region7: #{tpu_custom_call.1} parent=1 // pred_check_branch
      %37 = sbr.rel (0) target = $region9
    $region8: #{tpu_custom_call.1} parent=1 // pred_region
      %s38 = sadd.s32 0, 0
      %p39 = scmp.lt.s32.totalorder %s38, 0
      %s40 = scalar_select %p39, %s38, 0
      %s41 = smul.u32 4, %s40
      %s42 = ssub.s32 1, %s41
      %s43 = smul.u32 32, %s42
      %s45 = ssub.s32 128, %s43
      %46 = vsyncadd [#allocation5], %s45
      %p47 = scmp.ne.s32.totalorder 0, %s43
      %s48 = smul.addr %s41, 32
      %s49 = scalar_lea.hbm %s1, %s48
      %s50 = smul.u32 2, %s42
      %s51 = sshll.u32 [#allocation4], 4
      %s52 = int_to_ptr.vmem [resolvable:$true] %s51
      %s53 = sshll.u32 %s50, 4
      %57 = dma.hbm_to_vmem [thread:$0]  (%p47), %s49, %s53, %s52, [#allocation5], 32, 32, 2
    $region9: #{tpu_custom_call.1} parent=1 // pred_fallthru
      _
    // Predicated region
    $region10: #{tpu_custom_call.1} parent=1 // pred_check
      _
    $region11: #{tpu_custom_call.1} parent=1 // pred_check_branch
      %59 = sbr.rel (0) target = $region13
    $region12: #{tpu_custom_call.1} parent=1 // pred_region
      %s60 = sadd.s32 0, 0
      %p61 = scmp.lt.s32.totalorder %s60, 0
      %s62 = scalar_select %p61, %s60, 0
      %s63 = smul.u32 4, %s62
      %s64 = ssub.s32 1, %s63
      %s65 = smul.u32 32, %s64
      %p66 = scmp.lt.s32.totalorder %s63, 0
      %s67 = scalar_select %p66, %s63, 0
      %s68 = smul.addr %s67, 2
      %s69 = scalar_lea.vmem %s2, %s68
      %s70 = sadd.s32 0, 0
      %p71 = scmp.lt.s32.totalorder %s70, 0
      %s72 = scalar_select %p71, %s70, 0
      %s73 = smul.u32 4, %s72
      %s74 = ssub.s32 1, %s73
      %s75 = smul.u32 32, %s74
    $region13: #{tpu_custom_call.1} parent=1 // pred_fallthru
      _
    // Predicated region
    $region14: #{tpu_custom_call.1} parent=1 // pred_check
      _
    $region15: #{tpu_custom_call.1} parent=1 // pred_check_branch
      %77 = sbr.rel (0) target = $region17
    $region16: #{tpu_custom_call.1} parent=1 // pred_region
      %s78 = sadd.s32 0, 0
      %p79 = scmp.lt.s32.totalorder %s78, 0
      %s80 = scalar_select %p79, %s78, 0
      %s81 = smul.u32 4, %s80
      %s82 = ssub.s32 1, %s81
      %s83 = smul.u32 32, %s82
      %p84 = scmp.lt.s32.totalorder %s81, 0
      %s85 = scalar_select %p84, %s81, 0
      %s86 = smul.addr %s85, 2
      %s87 = scalar_lea.vmem %s3, %s86
      %s88 = sadd.s32 0, 0
      %p89 = scmp.lt.s32.totalorder %s88, 0
      %s90 = scalar_select %p89, %s88, 0
      %s91 = smul.u32 4, %s90
      %s92 = ssub.s32 1, %s91
      %s93 = smul.u32 32, %s92
    $region17: #{tpu_custom_call.1} parent=1 // pred_fallthru
      _
    // Predicated region
    $region18: #{tpu_custom_call.1} parent=1 // pred_check
      _
    $region19: #{tpu_custom_call.1} parent=1 // pred_check_branch
      %95 = sbr.rel (0) target = $region21
    $region20: #{tpu_custom_call.1} parent=1 // pred_region
      %s96 = sadd.s32 0, 0
      %p97 = scmp.lt.s32.totalorder %s96, 0
      %s98 = scalar_select %p97, %s96, 0
      %s99 = smul.u32 4, %s98
      %s100 = ssub.s32 1, %s99
      %s101 = smul.u32 32, %s100
      %p102 = scmp.lt.s32.totalorder %s99, 0
      %s103 = scalar_select %p102, %s99, 0
      %s104 = smul.addr %s103, 2
      %s105 = scalar_lea.vmem %s4, %s104
      %s106 = sadd.s32 0, 0
      %p107 = scmp.lt.s32.totalorder %s106, 0
      %s108 = scalar_select %p107, %s106, 0
      %s109 = smul.u32 4, %s108
      %s110 = ssub.s32 1, %s109
      %s111 = smul.u32 32, %s110
    $region21: #{tpu_custom_call.1} parent=1 // pred_fallthru
      _
    // Predicated region
    $region22: #{tpu_custom_call.1} parent=1 // pred_check
      _
    $region23: #{tpu_custom_call.1} parent=1 // pred_check_branch
      %113 = sbr.rel (0) target = $region25
    $region24: #{tpu_custom_call.1} parent=1 // pred_region
      %114 = dma.done [#allocation3], 128
    $region25: #{tpu_custom_call.1} parent=1 // pred_fallthru
      _
    // Predicated region
    $region26: #{tpu_custom_call.1} parent=1 // pred_check
      _
    $region27: #{tpu_custom_call.1} parent=1 // pred_check_branch
      %116 = sbr.rel (0) target = $region29
    $region28: #{tpu_custom_call.1} parent=1 // pred_region
      %117 = dma.done [#allocation5], 128
    $region29: #{tpu_custom_call.1} parent=1 // pred_fallthru
      _
    %s118 = sadd.s32 0, 0
    %p119 = scmp.lt.s32.totalorder %s118, 0
    %s120 = scalar_select %p119, %s118, 0
    %s121 = smul.u32 4, %s120
    %s122 = ssub.s32 1, %s121
    %s123 = smul.u32 32, %s122
    %p124 = scmp.lt.s32.totalorder %s121, 0
    %s125 = scalar_select %p124, %s121, 0
    %s126 = smul.addr %s125, 2
    %s127 = scalar_lea.vmem %s2, %s126
    %s128 = sadd.s32 0, 0
    %p129 = scmp.lt.s32.totalorder %s128, 0
    %s130 = scalar_select %p129, %s128, 0
    %s131 = smul.u32 4, %s130
    %s132 = ssub.s32 1, %s131
    %s133 = smul.u32 32, %s132
    %p134 = scmp.lt.s32.totalorder %s131, 0
    %s135 = scalar_select %p134, %s131, 0
    %s136 = smul.addr %s135, 2
    %s137 = scalar_lea.vmem %s3, %s136
    %s138 = sadd.s32 0, 0
    %p139 = scmp.lt.s32.totalorder %s138, 0
    %s140 = scalar_select %p139, %s138, 0
    %s141 = smul.u32 4, %s140
    %s142 = ssub.s32 1, %s141
    %s143 = smul.u32 32, %s142
    %p144 = scmp.lt.s32.totalorder %s141, 0
    %s145 = scalar_select %p144, %s141, 0
    %s146 = smul.addr %s145, 2
    %s147 = scalar_lea.vmem %s4, %s146
    %s148 = sadd.s32 0, 0
    %p149 = scmp.lt.s32.totalorder %s148, 0
    %s150 = scalar_select %p149, %s148, 0
    %s151 = smul.u32 4, %s150
    %s152 = ssub.s32 1, %s151
    %s153 = smul.u32 32, %s152
    %s154 = sadd.s32 0, 0
    %p155 = scmp.lt.s32.totalorder %s154, 0
    %s156 = scalar_select %p155, %s154, 0
    %s157 = smul.u32 4, %s156
    %s158 = ssub.s32 1, %s157
    %s159 = smul.u32 32, %s158
    %s160 = sadd.s32 0, 0
    %p161 = scmp.lt.s32.totalorder %s160, 0
    %s162 = scalar_select %p161, %s160, 0
    %s163 = smul.u32 4, %s162
    %s164 = ssub.s32 1, %s163
    %s165 = smul.u32 32, %s164
    %p166 = scmp.lt.s32.totalorder %s163, 0
    %s167 = scalar_select %p166, %s163, 0
    %s168 = smul.addr %s167, 2
    %s169 = scalar_lea.vmem %s2, %s168
    %s170 = sadd.s32 0, 0
    %p171 = scmp.lt.s32.totalorder %s170, 0
    %s172 = scalar_select %p171, %s170, 0
    %s173 = smul.u32 4, %s172
    %s174 = ssub.s32 1, %s173
    %s175 = smul.u32 32, %s174
    %s176 = sadd.s32 0, 0
    %p177 = scmp.lt.s32.totalorder %s176, 0
    %s178 = scalar_select %p177, %s176, 0
    %s179 = smul.u32 4, %s178
    %s180 = ssub.s32 1, %s179
    %s181 = smul.u32 32, %s180
    %p182 = scmp.lt.s32.totalorder %s179, 0
    %s183 = scalar_select %p182, %s179, 0
    %s184 = smul.addr %s183, 2
    %s185 = scalar_lea.vmem %s3, %s184
    %s186 = sadd.s32 0, 0
    %p187 = scmp.lt.s32.totalorder %s186, 0
    %s188 = scalar_select %p187, %s186, 0
    %s189 = smul.u32 4, %s188
    %s190 = ssub.s32 1, %s189
    %s191 = smul.u32 32, %s190
    %s192 = sadd.s32 0, 0
    %p193 = scmp.lt.s32.totalorder %s192, 0
    %s194 = scalar_select %p193, %s192, 0
    %s195 = smul.u32 4, %s194
    %s196 = ssub.s32 1, %s195
    %s197 = smul.u32 32, %s196
    %p198 = scmp.lt.s32.totalorder %s195, 0
    %s199 = scalar_select %p198, %s195, 0
    %s200 = smul.addr %s199, 2
    %s201 = scalar_lea.vmem %s4, %s200
    %s202 = sadd.s32 0, 0
    %p203 = scmp.lt.s32.totalorder %s202, 0
    %s204 = scalar_select %p203, %s202, 0
    %s205 = smul.u32 4, %s204
    %s206 = ssub.s32 1, %s205
    %s207 = smul.u32 32, %s206
    %s208 = sadd.s32 0, 0
    %p209 = scmp.eq.s32.totalorder 0, 0
    // Predicated region
    $region30: #{tpu_custom_call.1} parent=1 // pred_check
      %p210 = pneg %p209
    $region31: #{tpu_custom_call.1} parent=1 // pred_check_branch
      %212 = sbr.rel (%p210) target = $region33
    $region32: #{tpu_custom_call.1} parent=1 // pred_region
      %vm213 = vcmask 7168
      %214 = vst.msk [vmem:[%s5] sm:$0xff] %vm213, 0.0
      %215 = vst.msk [vmem:[%s6] sm:$0xff] %vm213, 0.0
    $region33: #{tpu_custom_call.1} parent=1 // pred_fallthru
      _
    %p216 = scmp.lt.s32.totalorder %s208, 0
    // Predicated region
    $region34: #{tpu_custom_call.1} parent=1 // pred_check
      %p217 = pneg %p216
    $region35: #{tpu_custom_call.1} parent=1 // pred_check_branch
      %219 = sbr.rel (%p217) target = $region37
    $region36: #{tpu_custom_call.1} parent=1 // pred_region
      %v220 = vld [vmem:[#allocation2] sm:$0xff]
      %v221 = vld [vmem:[#allocation4] sm:$0xff]
      %v222 = vlog2.pop %v220
      %v223 = vmul.f32 %v222, 0.6931472
      %v224 = vmax.f32 %v223, -100.0
      %v225 = vsub.f32 1.0, %v220
      %v226 = vlog2.pop %v225
      %v227 = vmul.f32 %v226, 0.6931472
      %v228 = vmax.f32 %v227, -100.0
      %v229 = vmul.f32 %v221, %v224
      %v230 = vsub.f32 1.0, %v221
      %v231 = vmul.f32 %v230, %v228
      %v232 = vadd.f32 %v229, %v231
      %v233 = vsub.f32 0.0, %v232
      %vm234 = vcmask 31744
      %v236 = vsel %vm234, %v233, 0
      %vm238 = vcmask 1043456
      %v240 = vsel %vm238, 1.0, 0
      %242 = vmatprep.subr.mxu0 0.0
      %243 = vmatpush1.msra.mxu0 0.0
      %244 = vmatprep.subr.mxu0 0.0
      %245 = vmatpush1.msra.mxu0 0.0
      %246 = vmatprep.subr.mxu0 0.0
      %247 = vmatpush1.msra.mxu0 0.0
      %248 = vmatprep.subr.mxu0 0.0
      %249 = vmatpush1.msra.mxu0 0.0
      %250 = vmatprep.subr.mxu0 0.0
      %251 = vmatpush1.msra.mxu0 0.0
      %252 = vmatprep.subr.mxu0 0.0
      %253 = vmatpush1.msra.mxu0 0.0
      %254 = vmatprep.subr.mxu0 0.0
      %255 = vmatpush1.msra.mxu0 0.0
      %256 = vmatprep.subr.mxu0 0.0
      %257 = vmatpush1.msra.mxu0 0.0
      %258 = vmatprep.subr.mxu0 0.0
      %259 = vmatpush1.msra.mxu0 0.0
      %260 = vmatprep.subr.mxu0 0.0
      %261 = vmatpush1.msra.mxu0 0.0
      %262 = vmatprep.subr.mxu0 0.0
      %263 = vmatpush1.msra.mxu0 0.0
      %264 = vmatprep.subr.mxu0 0.0
      %265 = vmatpush1.msra.mxu0 0.0
      %266 = vmatprep.subr.mxu0 0.0
      %267 = vmatpush1.msra.mxu0 0.0
      %268 = vmatprep.subr.mxu0 0.0
      %269 = vmatpush1.msra.mxu0 0.0
      %270 = vmatprep.subr.mxu0 0.0
      %271 = vmatpush1.msra.mxu0 0.0
      %272 = vmatprep.subr.mxu0 0.0
      %273 = vmatpush1.msra.mxu0 %v240
      %274 = vmatprep.subr.mxu0 0.0
      %275 = vmatpush2.msra.mxu0 0.0
      %276 = vmatprep.subr.mxu0 0.0
      %277 = vmatpush2.msra.mxu0 0.0
      %278 = vmatprep.subr.mxu0 0.0
      %279 = vmatpush2.msra.mxu0 0.0
      %280 = vmatprep.subr.mxu0 0.0
      %281 = vmatpush2.msra.mxu0 0.0
      %282 = vmatprep.subr.mxu0 0.0
      %283 = vmatpush2.msra.mxu0 0.0
      %284 = vmatprep.subr.mxu0 0.0
      %285 = vmatpush2.msra.mxu0 0.0
      %286 = vmatprep.subr.mxu0 0.0
      %287 = vmatpush2.msra.mxu0 0.0
      %288 = vmatprep.subr.mxu0 0.0
      %289 = vmatpush2.msra.mxu0 0.0
      %290 = vmatprep.subr.mxu0 0.0
      %291 = vmatpush2.msra.mxu0 0.0
      %292 = vmatprep.subr.mxu0 0.0
      %293 = vmatpush2.msra.mxu0 0.0
      %294 = vmatprep.subr.mxu0 0.0
      %295 = vmatpush2.msra.mxu0 0.0
      %296 = vmatprep.subr.mxu0 0.0
      %297 = vmatpush2.msra.mxu0 0.0
      %298 = vmatprep.subr.mxu0 0.0
      %299 = vmatpush2.msra.mxu0 0.0
      %300 = vmatprep.subr.mxu0 0.0
      %301 = vmatpush2.msra.mxu0 0.0
      %302 = vmatprep.subr.mxu0 0.0
      %303 = vmatpush2.msra.mxu0 0.0
      %304 = vmatprep.subr.mxu0 0.0
      %305 = vmatpush2.msra.mxu0 0.0
      %306 = vmatprep.mubr.f32.mxu0 0.0
      %307 = vmatmul.mubr.f32.gmra.mxu0 %v236
      %v308 = vpop.f32.mrf.mxu0
      %v309 = vadd.f32 0.0, %v308
      %v310 = vpop.f32.mrf.mxu0
      %311 = vdwg.mxu0
      %v312 = vld [vmem:[%s169] sm:$0xff]
      %v313 = vld [vmem:[%s185] sm:$0xff]
      %v314 = vld [vmem:[%s201] sm:$0xff]
      %v315 = vsub.f32 %v312, %v313
      %v316 = vadd.f32 %v315, 1e-06
      %v317 = vsub.f32 %v312, %v314
      %v318 = vadd.f32 %v317, 1e-06
      %v319 = vmul.f32 %v316, %v316
      %vm320 = vcmask 261120
      %v322 = vsel %vm320, %v319, 0
      %324 = vmatprep.subr.mxu0 0.0
      %325 = vmatpush1.msra.mxu0 0.0
      %326 = vmatprep.subr.mxu0 0.0
      %327 = vmatpush1.msra.mxu0 0.0
      %328 = vmatprep.subr.mxu0 0.0
      %329 = vmatpush1.msra.mxu0 0.0
      %330 = vmatprep.subr.mxu0 0.0
      %331 = vmatpush1.msra.mxu0 0.0
      %332 = vmatprep.subr.mxu0 0.0
      %333 = vmatpush1.msra.mxu0 0.0
      %334 = vmatprep.subr.mxu0 0.0
      %335 = vmatpush1.msra.mxu0 0.0
      %336 = vmatprep.subr.mxu0 0.0
      %337 = vmatpush1.msra.mxu0 0.0
      %338 = vmatprep.subr.mxu0 0.0
      %339 = vmatpush1.msra.mxu0 0.0
      %340 = vmatprep.subr.mxu0 0.0
      %341 = vmatpush1.msra.mxu0 0.0
      %342 = vmatprep.subr.mxu0 0.0
      %343 = vmatpush1.msra.mxu0 0.0
      %344 = vmatprep.subr.mxu0 0.0
      %345 = vmatpush1.msra.mxu0 0.0
      %346 = vmatprep.subr.mxu0 0.0
      %347 = vmatpush1.msra.mxu0 0.0
      %348 = vmatprep.subr.mxu0 0.0
      %349 = vmatpush1.msra.mxu0 1.0
      %350 = vmatprep.subr.mxu0 0.0
      %351 = vmatpush1.msra.mxu0 1.0
      %352 = vmatprep.subr.mxu0 0.0
      %353 = vmatpush1.msra.mxu0 1.0
      %354 = vmatprep.subr.mxu0 0.0
      %355 = vmatpush1.msra.mxu0 1.0
      %356 = vmatprep.subr.mxu0 0.0
      %357 = vmatpush2.msra.mxu0 0.0
      %358 = vmatprep.subr.mxu0 0.0
      %359 = vmatpush2.msra.mxu0 0.0
      %360 = vmatprep.subr.mxu0 0.0
      %361 = vmatpush2.msra.mxu0 0.0
      %362 = vmatprep.subr.mxu0 0.0
      %363 = vmatpush2.msra.mxu0 0.0
      %364 = vmatprep.subr.mxu0 0.0
      %365 = vmatpush2.msra.mxu0 0.0
      %366 = vmatprep.subr.mxu0 0.0
      %367 = vmatpush2.msra.mxu0 0.0
      %368 = vmatprep.subr.mxu0 0.0
      %369 = vmatpush2.msra.mxu0 0.0
      %370 = vmatprep.subr.mxu0 0.0
      %371 = vmatpush2.msra.mxu0 0.0
      %372 = vmatprep.subr.mxu0 0.0
      %373 = vmatpush2.msra.mxu0 0.0
      %374 = vmatprep.subr.mxu0 0.0
      %375 = vmatpush2.msra.mxu0 0.0
      %376 = vmatprep.subr.mxu0 0.0
      %377 = vmatpush2.msra.mxu0 0.0
      %378 = vmatprep.subr.mxu0 0.0
      %379 = vmatpush2.msra.mxu0 0.0
      %380 = vmatprep.subr.mxu0 0.0
      %381 = vmatpush2.msra.mxu0 0.0
      %382 = vmatprep.subr.mxu0 0.0
      %383 = vmatpush2.msra.mxu0 0.0
      %384 = vmatprep.subr.mxu0 0.0
      %385 = vmatpush2.msra.mxu0 0.0
      %386 = vmatprep.subr.mxu0 0.0
      %387 = vmatpush2.msra.mxu0 0.0
      %388 = vmatprep.mubr.f32.mxu0 0.0
      %389 = vmatmul.mubr.f32.gmra.mxu0 %v322
      %v390 = vpop.f32.mrf.mxu0
      %v391 = vadd.f32 0.0, %v390
      %v392 = vpop.f32.mrf.mxu0
      %393 = vdwg.mxu0
      %v394 = vrsqrt.pop %v391
      %v395 = vmul.f32 %v391, %v394
      %vm396 = vcmp.eq.f32.partialorder %v391, inf
      %v397 = vsel %vm396, %v391, %v395
      %vm398 = vcmp.eq.f32.partialorder %v391, 0.0
      %v399 = vand.u32 %v391, 2147483648
      %v400 = vsel %vm398, %v399, %v397
      %v401 = vmul.f32 %v318, %v318
      %v403 = vsel %vm320, %v401, 0
      %405 = vmatprep.subr.mxu0 0.0
      %406 = vmatpush1.msra.mxu0 0.0
      %407 = vmatprep.subr.mxu0 0.0
      %408 = vmatpush1.msra.mxu0 0.0
      %409 = vmatprep.subr.mxu0 0.0
      %410 = vmatpush1.msra.mxu0 0.0
      %411 = vmatprep.subr.mxu0 0.0
      %412 = vmatpush1.msra.mxu0 0.0
      %413 = vmatprep.subr.mxu0 0.0
      %414 = vmatpush1.msra.mxu0 0.0
      %415 = vmatprep.subr.mxu0 0.0
      %416 = vmatpush1.msra.mxu0 0.0
      %417 = vmatprep.subr.mxu0 0.0
      %418 = vmatpush1.msra.mxu0 0.0
      %419 = vmatprep.subr.mxu0 0.0
      %420 = vmatpush1.msra.mxu0 0.0
      %421 = vmatprep.subr.mxu0 0.0
      %422 = vmatpush1.msra.mxu0 0.0
      %423 = vmatprep.subr.mxu0 0.0
      %424 = vmatpush1.msra.mxu0 0.0
      %425 = vmatprep.subr.mxu0 0.0
      %426 = vmatpush1.msra.mxu0 0.0
      %427 = vmatprep.subr.mxu0 0.0
      %428 = vmatpush1.msra.mxu0 0.0
      %429 = vmatprep.subr.mxu0 0.0
      %430 = vmatpush1.msra.mxu0 1.0
      %431 = vmatprep.subr.mxu0 0.0
      %432 = vmatpush1.msra.mxu0 1.0
      %433 = vmatprep.subr.mxu0 0.0
      %434 = vmatpush1.msra.mxu0 1.0
      %435 = vmatprep.subr.mxu0 0.0
      %436 = vmatpush1.msra.mxu0 1.0
      %437 = vmatprep.subr.mxu0 0.0
      %438 = vmatpush2.msra.mxu0 0.0
      %439 = vmatprep.subr.mxu0 0.0
      %440 = vmatpush2.msra.mxu0 0.0
      %441 = vmatprep.subr.mxu0 0.0
      %442 = vmatpush2.msra.mxu0 0.0
      %443 = vmatprep.subr.mxu0 0.0
      %444 = vmatpush2.msra.mxu0 0.0
      %445 = vmatprep.subr.mxu0 0.0
      %446 = vmatpush2.msra.mxu0 0.0
      %447 = vmatprep.subr.mxu0 0.0
      %448 = vmatpush2.msra.mxu0 0.0
      %449 = vmatprep.subr.mxu0 0.0
      %450 = vmatpush2.msra.mxu0 0.0
      %451 = vmatprep.subr.mxu0 0.0
      %452 = vmatpush2.msra.mxu0 0.0
      %453 = vmatprep.subr.mxu0 0.0
      %454 = vmatpush2.msra.mxu0 0.0
      %455 = vmatprep.subr.mxu0 0.0
      %456 = vmatpush2.msra.mxu0 0.0
      %457 = vmatprep.subr.mxu0 0.0
      %458 = vmatpush2.msra.mxu0 0.0
      %459 = vmatprep.subr.mxu0 0.0
      %460 = vmatpush2.msra.mxu0 0.0
      %461 = vmatprep.subr.mxu0 0.0
      %462 = vmatpush2.msra.mxu0 0.0
      %463 = vmatprep.subr.mxu0 0.0
      %464 = vmatpush2.msra.mxu0 0.0
      %465 = vmatprep.subr.mxu0 0.0
      %466 = vmatpush2.msra.mxu0 0.0
      %467 = vmatprep.subr.mxu0 0.0
      %468 = vmatpush2.msra.mxu0 0.0
      %469 = vmatprep.mubr.f32.mxu0 0.0
      %470 = vmatmul.mubr.f32.gmra.mxu0 %v403
      %v471 = vpop.f32.mrf.mxu0
      %v472 = vadd.f32 0.0, %v471
      %v473 = vpop.f32.mrf.mxu0
      %474 = vdwg.mxu0
      %v475 = vrsqrt.pop %v472
      %v476 = vmul.f32 %v472, %v475
      %vm477 = vcmp.eq.f32.partialorder %v472, inf
      %v478 = vsel %vm477, %v472, %v476
      %vm479 = vcmp.eq.f32.partialorder %v472, 0.0
      %v480 = vand.u32 %v472, 2147483648
      %v481 = vsel %vm479, %v480, %v478
      %v482 = vsub.f32 %v481, %v400
      %v483 = vmax.f32 %v482, 0.0
      %v484 = vand.u32 2147483647, %v482
      %v485 = vsub.f32 0.0, %v484
      %v486 = vpow.pop %v485
      %v487 = vadd.f32 %v486, 1.0
      %v488 = vlog2.pop %v487
      %v489 = vmul.f32 %v488, 0.6931472
      %v490 = vrcp.pop 0.6931472
      %v491 = vmul.f32 %v489, %v490
      %v492 = vadd.f32 %v483, %v491
      %v493 = vadd.f32 %v492, 0.0
      %v494 = vld [vmem:[%s5] sm:$0xff]
      %v495 = vadd.f32 %v494, %v309
      %vm496 = vcmask 7168
      %497 = vst.msk [vmem:[%s5] sm:$0xff] %vm496, %v495
      %v498 = vld [vmem:[%s6] sm:$0xff]
      %v499 = vadd.f32 %v498, %v493
      %500 = vst.msk [vmem:[%s6] sm:$0xff] %vm496, %v499
    $region37: #{tpu_custom_call.1} parent=1 // pred_fallthru
      _
    %p501 = scmp.eq.s32.totalorder %s208, 0
    // Predicated region
    $region38: #{tpu_custom_call.1} parent=1 // pred_check
      %p502 = pneg %p501
    $region39: #{tpu_custom_call.1} parent=1 // pred_check_branch
      %504 = sbr.rel (%p502) target = $region41
    $region40: #{tpu_custom_call.1} parent=1 // pred_region
      %s505 = smul.u32 %s208, 8
      %v506 = vlaneseq
      %v507 = vshrl.u32 %v506, 7
      %v508 = vstv %s505
      %v509 = vadd.s32 %v508, %v507
      %vm510 = vcmp.lt.s32.totalorder %v509, 2
      %v511 = vld [vmem:[#allocation2] sm:$0xff]
      %v512 = vld [vmem:[#allocation4] sm:$0xff]
      %v513 = vlog2.pop %v511
      %v514 = vmul.f32 %v513, 0.6931472
      %v515 = vmax.f32 %v514, -100.0
      %v516 = vsub.f32 1.0, %v511
      %v517 = vlog2.pop %v516
      %v518 = vmul.f32 %v517, 0.6931472
      %v519 = vmax.f32 %v518, -100.0
      %v520 = vmul.f32 %v512, %v515
      %v521 = vsub.f32 1.0, %v512
      %v522 = vmul.f32 %v521, %v519
      %v523 = vadd.f32 %v520, %v522
      %v524 = vsub.f32 0.0, %v523
      %vm525 = vcmask 31744
      %v527 = vsel %vm525, %v524, 0
      %vm529 = vcmask 1043456
      %v531 = vsel %vm529, 1.0, 0
      %533 = vmatprep.subr.mxu0 0.0
      %534 = vmatpush1.msra.mxu0 0.0
      %535 = vmatprep.subr.mxu0 0.0
      %536 = vmatpush1.msra.mxu0 0.0
      %537 = vmatprep.subr.mxu0 0.0
      %538 = vmatpush1.msra.mxu0 0.0
      %539 = vmatprep.subr.mxu0 0.0
      %540 = vmatpush1.msra.mxu0 0.0
      %541 = vmatprep.subr.mxu0 0.0
      %542 = vmatpush1.msra.mxu0 0.0
      %543 = vmatprep.subr.mxu0 0.0
      %544 = vmatpush1.msra.mxu0 0.0
      %545 = vmatprep.subr.mxu0 0.0
      %546 = vmatpush1.msra.mxu0 0.0
      %547 = vmatprep.subr.mxu0 0.0
      %548 = vmatpush1.msra.mxu0 0.0
      %549 = vmatprep.subr.mxu0 0.0
      %550 = vmatpush1.msra.mxu0 0.0
      %551 = vmatprep.subr.mxu0 0.0
      %552 = vmatpush1.msra.mxu0 0.0
      %553 = vmatprep.subr.mxu0 0.0
      %554 = vmatpush1.msra.mxu0 0.0
      %555 = vmatprep.subr.mxu0 0.0
      %556 = vmatpush1.msra.mxu0 0.0
      %557 = vmatprep.subr.mxu0 0.0
      %558 = vmatpush1.msra.mxu0 0.0
      %559 = vmatprep.subr.mxu0 0.0
      %560 = vmatpush1.msra.mxu0 0.0
      %561 = vmatprep.subr.mxu0 0.0
      %562 = vmatpush1.msra.mxu0 0.0
      %563 = vmatprep.subr.mxu0 0.0
      %564 = vmatpush1.msra.mxu0 %v531
      %565 = vmatprep.subr.mxu0 0.0
      %566 = vmatpush2.msra.mxu0 0.0
      %567 = vmatprep.subr.mxu0 0.0
      %568 = vmatpush2.msra.mxu0 0.0
      %569 = vmatprep.subr.mxu0 0.0
      %570 = vmatpush2.msra.mxu0 0.0
      %571 = vmatprep.subr.mxu0 0.0
      %572 = vmatpush2.msra.mxu0 0.0
      %573 = vmatprep.subr.mxu0 0.0
      %574 = vmatpush2.msra.mxu0 0.0
      %575 = vmatprep.subr.mxu0 0.0
      %576 = vmatpush2.msra.mxu0 0.0
      %577 = vmatprep.subr.mxu0 0.0
      %578 = vmatpush2.msra.mxu0 0.0
      %579 = vmatprep.subr.mxu0 0.0
      %580 = vmatpush2.msra.mxu0 0.0
      %581 = vmatprep.subr.mxu0 0.0
      %582 = vmatpush2.msra.mxu0 0.0
      %583 = vmatprep.subr.mxu0 0.0
      %584 = vmatpush2.msra.mxu0 0.0
      %585 = vmatprep.subr.mxu0 0.0
      %586 = vmatpush2.msra.mxu0 0.0
      %587 = vmatprep.subr.mxu0 0.0
      %588 = vmatpush2.msra.mxu0 0.0
      %589 = vmatprep.subr.mxu0 0.0
      %590 = vmatpush2.msra.mxu0 0.0
      %591 = vmatprep.subr.mxu0 0.0
      %592 = vmatpush2.msra.mxu0 0.0
      %593 = vmatprep.subr.mxu0 0.0
      %594 = vmatpush2.msra.mxu0 0.0
      %595 = vmatprep.subr.mxu0 0.0
      %596 = vmatpush2.msra.mxu0 0.0
      %597 = vmatprep.mubr.f32.mxu0 0.0
      %598 = vmatmul.mubr.f32.gmra.mxu0 %v527
      %v599 = vpop.f32.mrf.mxu0
      %v600 = vadd.f32 0.0, %v599
      %v601 = vpop.f32.mrf.mxu0
      %602 = vdwg.mxu0
      %v603 = vsel %vm510, %v600, 0.0
      %v604 = vadd.f32 %v603, 0.0
      %v605 = vld [vmem:[%s169] sm:$0xff]
      %v606 = vld [vmem:[%s185] sm:$0xff]
      %v607 = vld [vmem:[%s201] sm:$0xff]
      %v608 = vsub.f32 %v605, %v606
      %v609 = vadd.f32 %v608, 1e-06
      %v610 = vsub.f32 %v605, %v607
      %v611 = vadd.f32 %v610, 1e-06
      %v612 = vmul.f32 %v609, %v609
      %vm613 = vcmask 261120
      %v615 = vsel %vm613, %v612, 0
      %617 = vmatprep.subr.mxu0 0.0
      %618 = vmatpush1.msra.mxu0 0.0
      %619 = vmatprep.subr.mxu0 0.0
      %620 = vmatpush1.msra.mxu0 0.0
      %621 = vmatprep.subr.mxu0 0.0
      %622 = vmatpush1.msra.mxu0 0.0
      %623 = vmatprep.subr.mxu0 0.0
      %624 = vmatpush1.msra.mxu0 0.0
      %625 = vmatprep.subr.mxu0 0.0
      %626 = vmatpush1.msra.mxu0 0.0
      %627 = vmatprep.subr.mxu0 0.0
      %628 = vmatpush1.msra.mxu0 0.0
      %629 = vmatprep.subr.mxu0 0.0
      %630 = vmatpush1.msra.mxu0 0.0
      %631 = vmatprep.subr.mxu0 0.0
      %632 = vmatpush1.msra.mxu0 0.0
      %633 = vmatprep.subr.mxu0 0.0
      %634 = vmatpush1.msra.mxu0 0.0
      %635 = vmatprep.subr.mxu0 0.0
      %636 = vmatpush1.msra.mxu0 0.0
      %637 = vmatprep.subr.mxu0 0.0
      %638 = vmatpush1.msra.mxu0 0.0
      %639 = vmatprep.subr.mxu0 0.0
      %640 = vmatpush1.msra.mxu0 0.0
      %641 = vmatprep.subr.mxu0 0.0
      %642 = vmatpush1.msra.mxu0 1.0
      %643 = vmatprep.subr.mxu0 0.0
      %644 = vmatpush1.msra.mxu0 1.0
      %645 = vmatprep.subr.mxu0 0.0
      %646 = vmatpush1.msra.mxu0 1.0
      %647 = vmatprep.subr.mxu0 0.0
      %648 = vmatpush1.msra.mxu0 1.0
      %649 = vmatprep.subr.mxu0 0.0
      %650 = vmatpush2.msra.mxu0 0.0
      %651 = vmatprep.subr.mxu0 0.0
      %652 = vmatpush2.msra.mxu0 0.0
      %653 = vmatprep.subr.mxu0 0.0
      %654 = vmatpush2.msra.mxu0 0.0
      %655 = vmatprep.subr.mxu0 0.0
      %656 = vmatpush2.msra.mxu0 0.0
      %657 = vmatprep.subr.mxu0 0.0
      %658 = vmatpush2.msra.mxu0 0.0
      %659 = vmatprep.subr.mxu0 0.0
      %660 = vmatpush2.msra.mxu0 0.0
      %661 = vmatprep.subr.mxu0 0.0
      %662 = vmatpush2.msra.mxu0 0.0
      %663 = vmatprep.subr.mxu0 0.0
      %664 = vmatpush2.msra.mxu0 0.0
      %665 = vmatprep.subr.mxu0 0.0
      %666 = vmatpush2.msra.mxu0 0.0
      %667 = vmatprep.subr.mxu0 0.0
      %668 = vmatpush2.msra.mxu0 0.0
      %669 = vmatprep.subr.mxu0 0.0
      %670 = vmatpush2.msra.mxu0 0.0
      %671 = vmatprep.subr.mxu0 0.0
      %672 = vmatpush2.msra.mxu0 0.0
      %673 = vmatprep.subr.mxu0 0.0
      %674 = vmatpush2.msra.mxu0 0.0
      %675 = vmatprep.subr.mxu0 0.0
      %676 = vmatpush2.msra.mxu0 0.0
      %677 = vmatprep.subr.mxu0 0.0
      %678 = vmatpush2.msra.mxu0 0.0
      %679 = vmatprep.subr.mxu0 0.0
      %680 = vmatpush2.msra.mxu0 0.0
      %681 = vmatprep.mubr.f32.mxu0 0.0
      %682 = vmatmul.mubr.f32.gmra.mxu0 %v615
      %v683 = vpop.f32.mrf.mxu0
      %v684 = vadd.f32 0.0, %v683
      %v685 = vpop.f32.mrf.mxu0
      %686 = vdwg.mxu0
      %v687 = vrsqrt.pop %v684
      %v688 = vmul.f32 %v684, %v687
      %vm689 = vcmp.eq.f32.partialorder %v684, inf
      %v690 = vsel %vm689, %v684, %v688
      %vm691 = vcmp.eq.f32.partialorder %v684, 0.0
      %v692 = vand.u32 %v684, 2147483648
      %v693 = vsel %vm691, %v692, %v690
      %v694 = vmul.f32 %v611, %v611
      %v696 = vsel %vm613, %v694, 0
      %698 = vmatprep.subr.mxu0 0.0
      %699 = vmatpush1.msra.mxu0 0.0
      %700 = vmatprep.subr.mxu0 0.0
      %701 = vmatpush1.msra.mxu0 0.0
      %702 = vmatprep.subr.mxu0 0.0
      %703 = vmatpush1.msra.mxu0 0.0
      %704 = vmatprep.subr.mxu0 0.0
      %705 = vmatpush1.msra.mxu0 0.0
      %706 = vmatprep.subr.mxu0 0.0
      %707 = vmatpush1.msra.mxu0 0.0
      %708 = vmatprep.subr.mxu0 0.0
      %709 = vmatpush1.msra.mxu0 0.0
      %710 = vmatprep.subr.mxu0 0.0
      %711 = vmatpush1.msra.mxu0 0.0
      %712 = vmatprep.subr.mxu0 0.0
      %713 = vmatpush1.msra.mxu0 0.0
      %714 = vmatprep.subr.mxu0 0.0
      %715 = vmatpush1.msra.mxu0 0.0
      %716 = vmatprep.subr.mxu0 0.0
      %717 = vmatpush1.msra.mxu0 0.0
      %718 = vmatprep.subr.mxu0 0.0
      %719 = vmatpush1.msra.mxu0 0.0
      %720 = vmatprep.subr.mxu0 0.0
      %721 = vmatpush1.msra.mxu0 0.0
      %722 = vmatprep.subr.mxu0 0.0
      %723 = vmatpush1.msra.mxu0 1.0
      %724 = vmatprep.subr.mxu0 0.0
      %725 = vmatpush1.msra.mxu0 1.0
      %726 = vmatprep.subr.mxu0 0.0
      %727 = vmatpush1.msra.mxu0 1.0
      %728 = vmatprep.subr.mxu0 0.0
      %729 = vmatpush1.msra.mxu0 1.0
      %730 = vmatprep.subr.mxu0 0.0
      %731 = vmatpush2.msra.mxu0 0.0
      %732 = vmatprep.subr.mxu0 0.0
      %733 = vmatpush2.msra.mxu0 0.0
      %734 = vmatprep.subr.mxu0 0.0
      %735 = vmatpush2.msra.mxu0 0.0
      %736 = vmatprep.subr.mxu0 0.0
      %737 = vmatpush2.msra.mxu0 0.0
      %738 = vmatprep.subr.mxu0 0.0
      %739 = vmatpush2.msra.mxu0 0.0
      %740 = vmatprep.subr.mxu0 0.0
      %741 = vmatpush2.msra.mxu0 0.0
      %742 = vmatprep.subr.mxu0 0.0
      %743 = vmatpush2.msra.mxu0 0.0
      %744 = vmatprep.subr.mxu0 0.0
      %745 = vmatpush2.msra.mxu0 0.0
      %746 = vmatprep.subr.mxu0 0.0
      %747 = vmatpush2.msra.mxu0 0.0
      %748 = vmatprep.subr.mxu0 0.0
      %749 = vmatpush2.msra.mxu0 0.0
      %750 = vmatprep.subr.mxu0 0.0
      %751 = vmatpush2.msra.mxu0 0.0
      %752 = vmatprep.subr.mxu0 0.0
      %753 = vmatpush2.msra.mxu0 0.0
      %754 = vmatprep.subr.mxu0 0.0
      %755 = vmatpush2.msra.mxu0 0.0
      %756 = vmatprep.subr.mxu0 0.0
      %757 = vmatpush2.msra.mxu0 0.0
      %758 = vmatprep.subr.mxu0 0.0
      %759 = vmatpush2.msra.mxu0 0.0
      %760 = vmatprep.subr.mxu0 0.0
      %761 = vmatpush2.msra.mxu0 0.0
      %762 = vmatprep.mubr.f32.mxu0 0.0
      %763 = vmatmul.mubr.f32.gmra.mxu0 %v696
      %v764 = vpop.f32.mrf.mxu0
      %v765 = vadd.f32 0.0, %v764
      %v766 = vpop.f32.mrf.mxu0
      %767 = vdwg.mxu0
      %v768 = vrsqrt.pop %v765
      %v769 = vmul.f32 %v765, %v768
      %vm770 = vcmp.eq.f32.partialorder %v765, inf
      %v771 = vsel %vm770, %v765, %v769
      %vm772 = vcmp.eq.f32.partialorder %v765, 0.0
      %v773 = vand.u32 %v765, 2147483648
      %v774 = vsel %vm772, %v773, %v771
      %v775 = vsub.f32 %v774, %v693
      %v776 = vmax.f32 %v775, 0.0
      %v777 = vand.u32 2147483647, %v775
      %v778 = vsub.f32 0.0, %v777
      %v779 = vpow.pop %v778
      %v780 = vadd.f32 %v779, 1.0
      %v781 = vlog2.pop %v780
      %v782 = vmul.f32 %v781, 0.6931472
      %v783 = vrcp.pop 0.6931472
      %v784 = vmul.f32 %v782, %v783
      %v785 = vadd.f32 %v776, %v784
      %v786 = vsel %vm510, %v785, 0.0
      %v787 = vadd.f32 %v786, 0.0
      %v788 = vld [vmem:[%s5] sm:$0xff]
      %v789 = vadd.f32 %v788, %v604
      %vm790 = vcmask 7168
      %791 = vst.msk [vmem:[%s5] sm:$0xff] %vm790, %v789
      %v792 = vld [vmem:[%s6] sm:$0xff]
      %v793 = vadd.f32 %v792, %v787
      %794 = vst.msk [vmem:[%s6] sm:$0xff] %vm790, %v793
    $region41: #{tpu_custom_call.1} parent=1 // pred_fallthru
      _
    // Predicated region
    $region42: #{tpu_custom_call.1} parent=1 // pred_check
      _
    $region43: #{tpu_custom_call.1} parent=1 // pred_check_branch
      %796 = sbr.rel (0) target = $region45
    $region44: #{tpu_custom_call.1} parent=1 // pred_region
      _
    $region45: #{tpu_custom_call.1} parent=1 // pred_fallthru
      _
    // Predicated region
    $region46: #{tpu_custom_call.1} parent=1 // pred_check
      _
    $region47: #{tpu_custom_call.1} parent=1 // pred_check_branch
      %798 = sbr.rel (0) target = $region49
    $region48: #{tpu_custom_call.1} parent=1 // pred_region
      _
    $region49: #{tpu_custom_call.1} parent=1 // pred_fallthru
      _
    // Predicated region
    $region50: #{tpu_custom_call.1} parent=1 // pred_check
      _
    $region51: #{tpu_custom_call.1} parent=1 // pred_check_branch
      %800 = sbr.rel (0) target = $region53
    $region52: #{tpu_custom_call.1} parent=1 // pred_region
      _
    $region53: #{tpu_custom_call.1} parent=1 // pred_fallthru
      _
    // Predicated region
    $region54: #{tpu_custom_call.1} parent=1 // pred_check
      _
    $region55: #{tpu_custom_call.1} parent=1 // pred_check_branch
      %802 = sbr.rel (0) target = $region57
    $region56: #{tpu_custom_call.1} parent=1 // pred_region
      _
    $region57: #{tpu_custom_call.1} parent=1 // pred_fallthru
      _
    %803 = vsyncpa [#allocation3], 1
    %804 = vsyncpa [#allocation5], 1

</llo_original>
